<compile_context>
chip_gen: v7x
topology: tpu7x:2x2x1
jax: 0.10.0
libtpu: 0.0.40
codegen_flags: <defaults>
</compile_context>

<pallas_src>
import jax
import jax.numpy as jnp
import numpy as np
from jax.experimental import pallas as pl
from jax.experimental.pallas import tpu as pltpu

STATE_DIM = 2
ACTION_DIM = 1
IN_DIM = STATE_DIM + ACTION_DIM      # 3
H1 = 128
H2 = 64
OUT_DIM = 1

# kernel-side (aligned) storage sizes
W1_ROWS = 8          # sublane-aligned storage for the 3 real input rows of W1
H2_PAD = 128         # hidden-2 padded to one lane group (lanes >= 64 are exactly zero)

MAX_TILE_B = 2048    # per-step working set ~2-3 MiB -> safe on v5e/v6e/v7x scoped VMEM


def _round_up(x, m):
    return ((x + m - 1) // m) * m


def _cdiv(a, b):
    return -(-a // b)


def _choose_tile_b(B):
    # Small batches: a single tile; splitting only adds ~0.35 us/step fixed overhead.
    if B <= 256:
        return _round_up(max(B, 1), 8)
    # Large batches: at least 2 balanced tiles (the "parallel" grid axis is the only way
    # this kernel feeds both v7x TensorCores), capped at MAX_TILE_B so the tile_b x 128
    # f32 temporaries stay comfortably inside v7x's smaller scoped VMEM.
    n_tiles = max(2, _cdiv(B, MAX_TILE_B))
    return min(MAX_TILE_B, _round_up(_cdiv(B, n_tiles), 8))


def _reward_mlp_kernel(x_ref, w1_ref, b1_ref, w2_ref, b2_ref, w3_ref, b3_ref, o_ref):
    """One batch tile of the fused 3-layer MLP.

    x:  (TILE_B, 3) f32 (stacked [delta_before, action, delta_after])
    w1: (8, 128) f32   b1: (1, 128) f32
    w2: (128, 128) bf16 (cols >= 64 are zero)   b2: (1, 128) f32
    w3: (1, 128) f32 (lanes >= 64 zero)         b3: (1, 1) f32
    o:  (TILE_B, 1) f32
    """
    x = x_ref[...]
    db = x[:, 0:1]
    act = x[:, 1:2]
    da = x[:, 2:3]

    # Layer 1: in_features = 3 -> three VPU broadcast-MACs (no MXU, no 128-wide K pad).
    h1 = (db * w1_ref[0:1, :]
          + act * w1_ref[1:2, :]
          + da * w1_ref[2:3, :]
          + b1_ref[...])
    h1 = jnp.maximum(h1, 0.0)

    # Layer 2: (TILE_B,128) @ (128,128) single-pass bf16 MXU matmul with f32 accumulate.
    # Zero-padded cols (>=64) stay exactly 0 through the bias and ReLU.
    h2 = jnp.dot(h1.astype(jnp.bfloat16), w2_ref[...],
                 preferred_element_type=jnp.float32) + b2_ref[...]
    h2 = jnp.maximum(h2, 0.0)

    # Layer 3: out_features = 1 -> XLU lane-reduce; narrow (TILE_B, 1) writeback
    # (4 B/row instead of a 128-lane slab).
    out = jnp.sum(h2 * w3_ref[...], axis=-1, keepdims=True) + b3_ref[...]
    o_ref[...] = out


def reward_network_forward(delta_before, action, delta_after, params, *, tile_b=None):
    """Forward pass matching the PyTorch RewardNetwork.

    delta_before, action, delta_after: [B, 1] each (they concatenate to the
    state_dim + action_dim = 3 input features of the MLP).  Returns [B, 1] float32.
    """
    w1p, b1p, w2p, b2p, w3p, b3p = params

    db = jnp.asarray(delta_before, jnp.float32).reshape(-1, 1)
    act = jnp.asarray(action, jnp.float32).reshape(-1, 1)
    da = jnp.asarray(delta_after, jnp.float32).reshape(-1, 1)
    B = db.shape[0]
    assert act.shape[0] == B and da.shape[0] == B

    # Single stacked [B, 3] input: one DMA / one narrow VMEM tile per grid step.
    x = jnp.concatenate([db, act, da], axis=-1)

    if tile_b is None:
        tile_b = _choose_tile_b(B)
    tile_b = _round_up(tile_b, 8)
    B_pad = _round_up(B, tile_b)
    if B_pad != B:
        # Tail pad values are irrelevant (rows are sliced off by out[:B]); zeros are fine.
        x = jnp.pad(x, ((0, B_pad - B), (0, 0)))

    grid = (B_pad // tile_b,)
    out = pl.pallas_call(
        _reward_mlp_kernel,
        out_shape=jax.ShapeDtypeStruct((B_pad, OUT_DIM), jnp.float32),
        grid_spec=pltpu.PrefetchScalarGridSpec(
            num_scalar_prefetch=0,
            grid=grid,
            in_specs=[
                pl.BlockSpec((tile_b, IN_DIM), lambda i: (i, 0)),  # stacked inputs
                # weights/biases: constant index_map -> stay resident in VMEM
                pl.BlockSpec((W1_ROWS, H1), lambda i: (0, 0)),     # w1 (f32)
                pl.BlockSpec((1, H1), lambda i: (0, 0)),           # b1 (f32)
                pl.BlockSpec((H1, H2_PAD), lambda i: (0, 0)),      # w2 (bf16)
                pl.BlockSpec((1, H2_PAD), lambda i: (0, 0)),       # b2 (f32)
                pl.BlockSpec((1, H2_PAD), lambda i: (0, 0)),       # w3 row (f32)
                pl.BlockSpec((1, 1), lambda i: (0, 0)),            # b3 (f32)
            ],
            out_specs=pl.BlockSpec((tile_b, 1), lambda i: (i, 0)),
        ),
        compiler_params=pltpu.CompilerParams(
            dimension_semantics=("parallel",)),
    )(x, w1p, b1p, w2p, b2p, w3p, b3p)

    return out[:B]


def init_params(key):
    """Deterministic init mimicking PyTorch nn.Linear default U(-1/sqrt(fan_in), +)."""
    def linear(k, fan_in, fan_out):
        kw, kb = jax.random.split(k)
        bound = 1.0 / np.sqrt(fan_in)
        # stored as [in, out] (transposed w.r.t. PyTorch's [out, in])
        w = jax.random.uniform(kw, (fan_in, fan_out), jnp.float32, -bound, bound)
        b = jax.random.uniform(kb, (fan_out,), jnp.float32, -bound, bound)
        return w, b

    k1, k2, k3 = jax.random.split(key, 3)
    w1, b1 = linear(k1, IN_DIM, H1)       # (3,128), (128,)
    w2, b2 = linear(k2, H1, H2)           # (128,64), (64,)
    w3, b3 = linear(k3, H2, OUT_DIM)      # (64,1),  (1,)

    # Kernel-side aligned parameters.  Zero padding keeps padded lanes exactly 0 through
    # the ReLUs.  w2 is stored in bf16 for a single-pass MXU matmul (f32 accumulate).
    w1p = jnp.zeros((W1_ROWS, H1), jnp.float32).at[:IN_DIM, :].set(w1)
    b1p = b1.reshape(1, H1)
    w2p = jnp.zeros((H1, H2_PAD), jnp.float32).at[:, :H2].set(w2).astype(jnp.bfloat16)
    b2p = jnp.zeros((1, H2_PAD), jnp.float32).at[0, :H2].set(b2)
    w3p = jnp.zeros((1, H2_PAD), jnp.float32).at[0, :H2].set(w3[:, 0])
    b3p = b3.reshape(1, 1)

    kernel_params = (w1p, b1p, w2p, b2p, w3p, b3p)
    raw_params = (w1, b1, w2, b2, w3, b3)
    return kernel_params, raw_params


def reference_forward(delta_before, action, delta_after, raw_params):
    """Pure f32 reference (matches the PyTorch module exactly)."""
    w1, b1, w2, b2, w3, b3 = raw_params
    x = jnp.concatenate([delta_before, action, delta_after], axis=-1).astype(jnp.float32)
    h1 = jnp.maximum(x @ w1 + b1, 0.0)
    h2 = jnp.maximum(h1 @ w2 + b2, 0.0)
    return h2 @ w3 + b3


if __name__ == "__main__":
    key = jax.random.PRNGKey(0)
    kp, kd1, ka, kd2 = jax.random.split(key, 4)

    params, raw_params = init_params(kp)

    # Small demo shapes: B deliberately NOT a multiple of the tile so the padded-tail
    # path is exercised, and tile_b=8 so the "parallel" grid has multiple steps.
    B = 20
    delta_before = jax.random.normal(kd1, (B, 1), jnp.float32)
    action = jax.random.normal(ka, (B, 1), jnp.float32)
    delta_after = jax.random.normal(kd2, (B, 1), jnp.float32)

    ref = reference_forward(delta_before, action, delta_after, raw_params)

    # bf16 layer-2 matmul -> tolerance loosened from 1e-5 to (2e-2 rtol, 5e-3 atol).
    TOL = dict(rtol=2e-2, atol=5e-3)

    # multi-tile path (grid = 3, padded tail)
    out_tiled = reward_network_forward(delta_before, action, delta_after, params, tile_b=8)
    out_tiled = jax.block_until_ready(out_tiled)
    np.testing.assert_allclose(np.asarray(out_tiled), np.asarray(ref), **TOL)

    # default tile-selection path (single tile at this small B)
    out_def = reward_network_forward(delta_before, action, delta_after, params)
    out_def = jax.block_until_ready(out_def)
    np.testing.assert_allclose(np.asarray(out_def), np.asarray(ref), **TOL)

    assert out_tiled.shape == (B, 1) and out_tiled.dtype == jnp.float32
    print("KERNEL_OK")
</pallas_src>

<mosaic_0001>
module attributes {stable_mosaic.version = 11 : i64} {
  func.func @_reward_mlp_kernel(%arg0: i32, %arg1: memref<8x3xf32, #tpu.memory_space<vmem>>, %arg2: memref<8x128xf32, #tpu.memory_space<vmem>>, %arg3: memref<1x128xf32, #tpu.memory_space<vmem>>, %arg4: memref<128x128xbf16, #tpu.memory_space<vmem>>, %arg5: memref<1x128xf32, #tpu.memory_space<vmem>>, %arg6: memref<1x128xf32, #tpu.memory_space<vmem>>, %arg7: memref<1x1xf32, #tpu.memory_space<vmem>>, %arg8: memref<8x1xf32, #tpu.memory_space<vmem>>) attributes {dimension_semantics = [#tpu.dimension_semantics<parallel>], iteration_bounds = array<i64: 3>, scalar_prefetch = 0 : i64, scratch_operands = 0 : i64, tpu.core_type = #tpu.core_type<tc>, window_params = [{transform_indices = @transform_0, window_bounds = array<i64: 8, 3>}, {pipeline_mode = #tpu.pipeline_mode<synchronous>, transform_indices = @transform_1, window_bounds = array<i64: 8, 128>}, {pipeline_mode = #tpu.pipeline_mode<synchronous>, transform_indices = @transform_2, window_bounds = array<i64: 1, 128>}, {pipeline_mode = #tpu.pipeline_mode<synchronous>, transform_indices = @transform_3, window_bounds = array<i64: 128, 128>}, {pipeline_mode = #tpu.pipeline_mode<synchronous>, transform_indices = @transform_4, window_bounds = array<i64: 1, 128>}, {pipeline_mode = #tpu.pipeline_mode<synchronous>, transform_indices = @transform_5, window_bounds = array<i64: 1, 128>}, {pipeline_mode = #tpu.pipeline_mode<synchronous>, transform_indices = @transform_6, window_bounds = array<i64: 1, 1>}, {transform_indices = @transform_7, window_bounds = array<i64: 8, 1>}]} {
    %c0 = arith.constant 0 : index
    %c0_0 = arith.constant 0 : index
    %0 = vector.load %arg1[%c0, %c0_0] : memref<8x3xf32, #tpu.memory_space<vmem>>, vector<8x3xf32>
    %1 = vector.extract_strided_slice %0 {offsets = [0, 0], sizes = [8, 1], strides = [1, 1]} : vector<8x3xf32> to vector<8x1xf32>
    %2 = vector.extract_strided_slice %0 {offsets = [0, 1], sizes = [8, 1], strides = [1, 1]} : vector<8x3xf32> to vector<8x1xf32>
    %3 = vector.extract_strided_slice %0 {offsets = [0, 2], sizes = [8, 1], strides = [1, 1]} : vector<8x3xf32> to vector<8x1xf32>
    %c0_1 = arith.constant 0 : index
    %c0_2 = arith.constant 0 : index
    %4 = vector.load %arg2[%c0_1, %c0_2] : memref<8x128xf32, #tpu.memory_space<vmem>>, vector<1x128xf32>
    %5 = vector.broadcast %1 : vector<8x1xf32> to vector<8x128xf32>
    %6 = vector.broadcast %4 : vector<1x128xf32> to vector<8x128xf32>
    %7 = arith.mulf %5, %6 : vector<8x128xf32>
    %c1 = arith.constant 1 : index
    %c0_3 = arith.constant 0 : index
    %8 = vector.load %arg2[%c1, %c0_3] : memref<8x128xf32, #tpu.memory_space<vmem>>, vector<1x128xf32>
    %9 = vector.broadcast %2 : vector<8x1xf32> to vector<8x128xf32>
    %10 = vector.broadcast %8 : vector<1x128xf32> to vector<8x128xf32>
    %11 = arith.mulf %9, %10 : vector<8x128xf32>
    %12 = arith.addf %7, %11 : vector<8x128xf32>
    %c2 = arith.constant 2 : index
    %c0_4 = arith.constant 0 : index
    %13 = vector.load %arg2[%c2, %c0_4] : memref<8x128xf32, #tpu.memory_space<vmem>>, vector<1x128xf32>
    %14 = vector.broadcast %3 : vector<8x1xf32> to vector<8x128xf32>
    %15 = vector.broadcast %13 : vector<1x128xf32> to vector<8x128xf32>
    %16 = arith.mulf %14, %15 : vector<8x128xf32>
    %17 = arith.addf %12, %16 : vector<8x128xf32>
    %c0_5 = arith.constant 0 : index
    %c0_6 = arith.constant 0 : index
    %18 = vector.load %arg3[%c0_5, %c0_6] : memref<1x128xf32, #tpu.memory_space<vmem>>, vector<1x128xf32>
    %19 = vector.broadcast %18 : vector<1x128xf32> to vector<8x128xf32>
    %20 = arith.addf %17, %19 : vector<8x128xf32>
    %cst = arith.constant 0.000000e+00 : f32
    %21 = vector.broadcast %cst : f32 to vector<8x128xf32>
    %22 = arith.maximumf %20, %21 : vector<8x128xf32>
    %23 = arith.truncf %22 : vector<8x128xf32> to vector<8x128xbf16>
    %c0_7 = arith.constant 0 : index
    %c0_8 = arith.constant 0 : index
    %24 = vector.load %arg4[%c0_7, %c0_8] : memref<128x128xbf16, #tpu.memory_space<vmem>>, vector<128x128xbf16>
    %cst_9 = arith.constant dense<0.000000e+00> : vector<8x128xf32>
    %25 = tpu.matmul %23, %24, %cst_9 {dimension_numbers = #tpu.dot_dimension_numbers<[1], [0], [0], [1], [0, 0, 1, 1], [], []>} : vector<8x128xbf16>, vector<128x128xbf16>, vector<8x128xf32> -> vector<8x128xf32>
    %c0_10 = arith.constant 0 : index
    %c0_11 = arith.constant 0 : index
    %26 = vector.load %arg5[%c0_10, %c0_11] : memref<1x128xf32, #tpu.memory_space<vmem>>, vector<1x128xf32>
    %27 = vector.broadcast %26 : vector<1x128xf32> to vector<8x128xf32>
    %28 = arith.addf %25, %27 : vector<8x128xf32>
    %cst_12 = arith.constant 0.000000e+00 : f32
    %29 = vector.broadcast %cst_12 : f32 to vector<8x128xf32>
    %30 = arith.maximumf %28, %29 : vector<8x128xf32>
    %c0_13 = arith.constant 0 : index
    %c0_14 = arith.constant 0 : index
    %31 = vector.load %arg6[%c0_13, %c0_14] : memref<1x128xf32, #tpu.memory_space<vmem>>, vector<1x128xf32>
    %32 = vector.broadcast %31 : vector<1x128xf32> to vector<8x128xf32>
    %33 = arith.mulf %30, %32 : vector<8x128xf32>
    %cst_15 = arith.constant dense<0.000000e+00> : vector<8xf32>
    %34 = vector.multi_reduction <add>, %33, %cst_15 [1] : vector<8x128xf32> to vector<8xf32>
    %35 = vector.shape_cast %34 : vector<8xf32> to vector<8x1xf32>
    %c0_16 = arith.constant 0 : index
    %c0_17 = arith.constant 0 : index
    %36 = vector.load %arg7[%c0_16, %c0_17] : memref<1x1xf32, #tpu.memory_space<vmem>>, vector<1x1xf32>
    %37 = vector.broadcast %36 : vector<1x1xf32> to vector<8x1xf32>
    %38 = arith.addf %35, %37 : vector<8x1xf32>
    %c0_18 = arith.constant 0 : index
    %c0_19 = arith.constant 0 : index
    %39 = vector.load %arg8[%c0_18, %c0_19] : memref<8x1xf32, #tpu.memory_space<vmem>>, vector<8x1xf32>
    tpu.vector_store %arg8[%c0_18, %c0_19], %38 {strides = array<i32>} : memref<8x1xf32, #tpu.memory_space<vmem>>, vector<8x1xf32>,
    return
  }
  func.func @transform_0(%arg0: i32) -> (i32, i32) {
    %c0_i32 = arith.constant 0 : i32
    %c0_i32_0 = arith.constant 0 : i32
    return %arg0, %c0_i32 : i32, i32
  }
  func.func @transform_1(%arg0: i32) -> (i32, i32) {
    %c0_i32 = arith.constant 0 : i32
    %c0_i32_0 = arith.constant 0 : i32
    %c0_i32_1 = arith.constant 0 : i32
    return %c0_i32, %c0_i32_0 : i32, i32
  }
  func.func @transform_2(%arg0: i32) -> (i32, i32) {
    %c0_i32 = arith.constant 0 : i32
    %c0_i32_0 = arith.constant 0 : i32
    %c0_i32_1 = arith.constant 0 : i32
    return %c0_i32, %c0_i32_0 : i32, i32
  }
  func.func @transform_3(%arg0: i32) -> (i32, i32) {
    %c0_i32 = arith.constant 0 : i32
    %c0_i32_0 = arith.constant 0 : i32
    %c0_i32_1 = arith.constant 0 : i32
    return %c0_i32, %c0_i32_0 : i32, i32
  }
  func.func @transform_4(%arg0: i32) -> (i32, i32) {
    %c0_i32 = arith.constant 0 : i32
    %c0_i32_0 = arith.constant 0 : i32
    %c0_i32_1 = arith.constant 0 : i32
    return %c0_i32, %c0_i32_0 : i32, i32
  }
  func.func @transform_5(%arg0: i32) -> (i32, i32) {
    %c0_i32 = arith.constant 0 : i32
    %c0_i32_0 = arith.constant 0 : i32
    %c0_i32_1 = arith.constant 0 : i32
    return %c0_i32, %c0_i32_0 : i32, i32
  }
  func.func @transform_6(%arg0: i32) -> (i32, i32) {
    %c0_i32 = arith.constant 0 : i32
    %c0_i32_0 = arith.constant 0 : i32
    %c0_i32_1 = arith.constant 0 : i32
    return %c0_i32, %c0_i32_0 : i32, i32
  }
  func.func @transform_7(%arg0: i32) -> (i32, i32) {
    %c0_i32 = arith.constant 0 : i32
    %c0_i32_0 = arith.constant 0 : i32
    return %arg0, %c0_i32 : i32, i32
  }
}

</mosaic_0001>

<llo_original>
// kernel: tpu_custom_call.1
$region0: #{tpu_custom_call.1}
  #allocation0 [shape = 'u32[]', space=smem, size = 0x4, offset = 0x4, fixed_abs, tag = 'smem constant byte address 0x4 - core index']
  #allocation1 [shape = 'u32[144,128]{1,0:T(1,128)}', space=vmem, size = 0x12000, scoped, tag = 'internal scratch']
  #allocation2 [shape = 'f32[1,1]{1,0:T(1,128)S(1)}', space=vmem, size = 0x200, scoped, tag = 'scoped memory for tpu_custom_call.1']
  %s0 = inlined_call_operand.vmem [shape: f32[24,3], index: 0, kind: input, shape index: {}]
  %s1 = inlined_call_operand.vmem [shape: f32[8,128], index: 1, kind: input, shape index: {}]
  %s2 = inlined_call_operand.vmem [shape: f32[1,128], index: 2, kind: input, shape index: {}]
  %s3 = inlined_call_operand.hbm [shape: bf16[128,128], index: 3, kind: input, shape index: {}]
  %s4 = inlined_call_operand.vmem [shape: f32[1,128], index: 4, kind: input, shape index: {}]
  %s5 = inlined_call_operand.vmem [shape: f32[1,128], index: 5, kind: input, shape index: {}]
  %s6 = inlined_call_operand.<no memory space> [shape: f32[1,1], index: 6, kind: input, shape index: {}]
  %s7 = inlined_call_operand.vmem [shape: f32[24,1], index: 7, kind: output, shape index: {}]
  %s8 = sld [smem:[#allocation0]]
  $region65: #{tpu_custom_call.1} parent=0
    _
  %s10 = ssub.s32 1, %s8
  %s11 = scalar_select 0, %s10, %s8
  %v12 = vstv %s6
  %13 = vst [vmem:[#allocation2] sm:$0x1] %v12
  $region1: #{tpu_custom_call.1} parent=0
    #allocation3 [shape = 'u8[32768]{0}', space=vmem, size = 0x8000, scoped, tag = 'input window, operand 3, single buffered']
    #allocation4 [shape = 's32[2]{0}', space=sflag, size = 0x8, scoped, tag = 'scoped memory for tpu_custom_call.1']
    %14 = vsyncpa [#allocation4], 0
    loop: start=0, step=1, limit=5
    $region2: #{tpu_custom_call.1} parent=1 // loop_pre_header
      _
    $region3: #{tpu_custom_call.1} parent=1 // loop_header
      %s16 = sphi 0, %s20
      %p17 = scmp.ge.s32.totalorder %s16, 5
      %s26 = sphi 0, %s28
      %s29 = sphi 0, %s26
      %s30 = sphi 0, %s29
      %s46 = sphi 0, %s30
      %s50 = sphi 0, %s50
      %s52 = sphi 0, %s50
      %s53 = sphi 0, %s52
      %s67 = sphi 0, %s53
      %s71 = sphi 0, %s71
      %s73 = sphi 0, %s71
      %s74 = sphi 0, %s73
      %s88 = sphi 0, %s74
      %s92 = sphi 0, %s92
      %s94 = sphi 0, %s92
      %s95 = sphi 0, %s94
      %s109 = sphi 0, %s95
      %s113 = sphi 0, %s113
      %s115 = sphi 0, %s113
      %s116 = sphi 0, %s115
      %s130 = sphi 0, %s116
      %s134 = sphi 0, %s134
      %s136 = sphi 0, %s134
      %s137 = sphi 0, %s136
      %s151 = sphi 0, %s137
      %s155 = sphi 0, %s155
      %s157 = sphi 0, %s155
      %s158 = sphi 0, %s157
      %s172 = sphi 0, %s158
      %s178 = sphi 0, %s180
      %s181 = sphi 0, %s178
      %s182 = sphi 0, %s181
      %s198 = sphi 0, %s182
    $region4: #{tpu_custom_call.1} parent=1 // loop_header_branch
      %19 = sbr.rel (%p17) target = $region8
    $region5: #{tpu_custom_call.1} parent=1 // loop_body
      %s21 = ssub.s32 %s16, 1
      %s22 = ssub.s32 %s16, 2
      %s23 = sadd.s32 %s16, 1
      %s24 = ssub.s32 %s16, %s23
      %p25 = scmp.eq.s32.totalorder %s24, 0
      %s27 = sadd.s32 %s26, 1
      %s28 = scalar_select %p25, %s26, %s27
      %p31 = pneg %p25
      %p32 = scmp.eq.s32.totalorder %s16, 2
      %p33 = por %p31, %p32
      %p34 = scmp.ne.s32.totalorder %s26, %s29
      %p35 = scmp.eq.s32.totalorder %s16, 0
      %p36 = por %p34, %p35
      %p37 = scmp.ne.s32.totalorder %s26, %s29
      %p38 = scmp.eq.s32.totalorder %s21, 2
      %p39 = por %p37, %p38
      %p40 = scmp.ne.s32.totalorder %s29, %s30
      %p41 = scmp.eq.s32.totalorder %s21, 0
      %p42 = por %p40, %p41
      %p43 = scmp.ne.s32.totalorder %s29, %s30
      %p44 = scmp.eq.s32.totalorder %s22, 2
      %p45 = por %p43, %p44
      %p47 = scmp.ne.s32.totalorder %s30, %s46
      %p48 = scmp.eq.s32.totalorder %s22, 0
      %p49 = por %p47, %p48
      %s51 = sadd.s32 %s50, 1
      %p54 = scmp.eq.s32.totalorder %s16, 2
      %p55 = scmp.ne.s32.totalorder %s50, %s52
      %p56 = scmp.eq.s32.totalorder %s16, 0
      %p57 = por %p55, %p56
      %p58 = scmp.ne.s32.totalorder %s50, %s52
      %p59 = scmp.eq.s32.totalorder %s21, 2
      %p60 = por %p58, %p59
      %p61 = scmp.ne.s32.totalorder %s52, %s53
      %p62 = scmp.eq.s32.totalorder %s21, 0
      %p63 = por %p61, %p62
      %p64 = scmp.ne.s32.totalorder %s52, %s53
      %p65 = scmp.eq.s32.totalorder %s22, 2
      %p66 = por %p64, %p65
      %p68 = scmp.ne.s32.totalorder %s53, %s67
      %p69 = scmp.eq.s32.totalorder %s22, 0
      %p70 = por %p68, %p69
      %s72 = sadd.s32 %s71, 1
      %p75 = scmp.eq.s32.totalorder %s16, 2
      %p76 = scmp.ne.s32.totalorder %s71, %s73
      %p77 = scmp.eq.s32.totalorder %s16, 0
      %p78 = por %p76, %p77
      %p79 = scmp.ne.s32.totalorder %s71, %s73
      %p80 = scmp.eq.s32.totalorder %s21, 2
      %p81 = por %p79, %p80
      %p82 = scmp.ne.s32.totalorder %s73, %s74
      %p83 = scmp.eq.s32.totalorder %s21, 0
      %p84 = por %p82, %p83
      %p85 = scmp.ne.s32.totalorder %s73, %s74
      %p86 = scmp.eq.s32.totalorder %s22, 2
      %p87 = por %p85, %p86
      %p89 = scmp.ne.s32.totalorder %s74, %s88
      %p90 = scmp.eq.s32.totalorder %s22, 0
      %p91 = por %p89, %p90
      %s93 = sadd.s32 %s92, 1
      %p96 = scmp.eq.s32.totalorder %s16, 2
      %p97 = scmp.ne.s32.totalorder %s92, %s94
      %p98 = scmp.eq.s32.totalorder %s16, 0
      %p99 = por %p97, %p98
      %p100 = scmp.ne.s32.totalorder %s92, %s94
      %p101 = scmp.eq.s32.totalorder %s21, 2
      %p102 = por %p100, %p101
      %p103 = scmp.ne.s32.totalorder %s94, %s95
      %p104 = scmp.eq.s32.totalorder %s21, 0
      %p105 = por %p103, %p104
      %p106 = scmp.ne.s32.totalorder %s94, %s95
      %p107 = scmp.eq.s32.totalorder %s22, 2
      %p108 = por %p106, %p107
      %p110 = scmp.ne.s32.totalorder %s95, %s109
      %p111 = scmp.eq.s32.totalorder %s22, 0
      %p112 = por %p110, %p111
      %s114 = sadd.s32 %s113, 1
      %p117 = scmp.eq.s32.totalorder %s16, 2
      %p118 = scmp.ne.s32.totalorder %s113, %s115
      %p119 = scmp.eq.s32.totalorder %s16, 0
      %p120 = por %p118, %p119
      %p121 = scmp.ne.s32.totalorder %s113, %s115
      %p122 = scmp.eq.s32.totalorder %s21, 2
      %p123 = por %p121, %p122
      %p124 = scmp.ne.s32.totalorder %s115, %s116
      %p125 = scmp.eq.s32.totalorder %s21, 0
      %p126 = por %p124, %p125
      %p127 = scmp.ne.s32.totalorder %s115, %s116
      %p128 = scmp.eq.s32.totalorder %s22, 2
      %p129 = por %p127, %p128
      %p131 = scmp.ne.s32.totalorder %s116, %s130
      %p132 = scmp.eq.s32.totalorder %s22, 0
      %p133 = por %p131, %p132
      %s135 = sadd.s32 %s134, 1
      %p138 = scmp.eq.s32.totalorder %s16, 2
      %p139 = scmp.ne.s32.totalorder %s134, %s136
      %p140 = scmp.eq.s32.totalorder %s16, 0
      %p141 = por %p139, %p140
      %p142 = scmp.ne.s32.totalorder %s134, %s136
      %p143 = scmp.eq.s32.totalorder %s21, 2
      %p144 = por %p142, %p143
      %p145 = scmp.ne.s32.totalorder %s136, %s137
      %p146 = scmp.eq.s32.totalorder %s21, 0
      %p147 = por %p145, %p146
      %p148 = scmp.ne.s32.totalorder %s136, %s137
      %p149 = scmp.eq.s32.totalorder %s22, 2
      %p150 = por %p148, %p149
      %p152 = scmp.ne.s32.totalorder %s137, %s151
      %p153 = scmp.eq.s32.totalorder %s22, 0
      %p154 = por %p152, %p153
      %s156 = sadd.s32 %s155, 1
      %p159 = scmp.eq.s32.totalorder %s16, 2
      %p160 = scmp.ne.s32.totalorder %s155, %s157
      %p161 = scmp.eq.s32.totalorder %s16, 0
      %p162 = por %p160, %p161
      %p163 = scmp.ne.s32.totalorder %s155, %s157
      %p164 = scmp.eq.s32.totalorder %s21, 2
      %p165 = por %p163, %p164
      %p166 = scmp.ne.s32.totalorder %s157, %s158
      %p167 = scmp.eq.s32.totalorder %s21, 0
      %p168 = por %p166, %p167
      %p169 = scmp.ne.s32.totalorder %s157, %s158
      %p170 = scmp.eq.s32.totalorder %s22, 2
      %p171 = por %p169, %p170
      %p173 = scmp.ne.s32.totalorder %s158, %s172
      %p174 = scmp.eq.s32.totalorder %s22, 0
      %p175 = por %p173, %p174
      %s176 = ssub.s32 %s16, %s23
      %p177 = scmp.eq.s32.totalorder %s176, 0
      %s179 = sadd.s32 %s178, 1
      %s180 = scalar_select %p177, %s178, %s179
      %p183 = pneg %p177
      %p184 = scmp.eq.s32.totalorder %s16, 2
      %p185 = por %p183, %p184
      %p186 = scmp.ne.s32.totalorder %s178, %s181
      %p187 = scmp.eq.s32.totalorder %s16, 0
      %p188 = por %p186, %p187
      %p189 = scmp.ne.s32.totalorder %s178, %s181
      %p190 = scmp.eq.s32.totalorder %s21, 2
      %p191 = por %p189, %p190
      %p192 = scmp.ne.s32.totalorder %s181, %s182
      %p193 = scmp.eq.s32.totalorder %s21, 0
      %p194 = por %p192, %p193
      %p195 = scmp.ne.s32.totalorder %s181, %s182
      %p196 = scmp.eq.s32.totalorder %s22, 2
      %p197 = por %p195, %p196
      %p199 = scmp.ne.s32.totalorder %s182, %s198
      %p200 = scmp.eq.s32.totalorder %s22, 0
      %p201 = por %p199, %p200
      %p202 = scmp.le.s32.totalorder 1, %s16
      %p203 = scmp.lt.s32.totalorder %s16, 4
      %p204 = pnand %p202, %p203
      %p205 = pneg %p204
      // Predicated region
      $region9: #{tpu_custom_call.1} parent=5 // pred_check
        _
      $region10: #{tpu_custom_call.1} parent=5 // pred_check_branch
        %207 = sbr.rel (%p204) target = $region12
      $region11: #{tpu_custom_call.1} parent=5 // pred_region
        %s208 = ssub.s32 %s16, 1
        // Predicated region
        $region13: #{tpu_custom_call.1} parent=11 // pred_check
          %p209 = pneg %p63
        $region14: #{tpu_custom_call.1} parent=11 // pred_check_branch
          %211 = sbr.rel (%p209) target = $region16
        $region15: #{tpu_custom_call.1} parent=11 // pred_region
          _
        $region16: #{tpu_custom_call.1} parent=11 // pred_fallthru
          _
        // Predicated region
        $region17: #{tpu_custom_call.1} parent=11 // pred_check
          %p212 = pneg %p84
        $region18: #{tpu_custom_call.1} parent=11 // pred_check_branch
          %214 = sbr.rel (%p212) target = $region20
        $region19: #{tpu_custom_call.1} parent=11 // pred_region
          _
        $region20: #{tpu_custom_call.1} parent=11 // pred_fallthru
          _
        // Predicated region
        $region21: #{tpu_custom_call.1} parent=11 // pred_check
          %p215 = pneg %p105
        $region22: #{tpu_custom_call.1} parent=11 // pred_check_branch
          %217 = sbr.rel (%p215) target = $region24
        $region23: #{tpu_custom_call.1} parent=11 // pred_region
          %s219 = ssub.s32 1024, 1024
          %220 = vsyncadd [#allocation4], %s219
          %s221 = sshll.u32 [#allocation3], 4
          %s222 = int_to_ptr.vmem [resolvable:$true] %s221
          %227 = dma.hbm_to_vmem [thread:$0]  %s3, 1024, %s222, [#allocation4], 64, 64, 4
        $region24: #{tpu_custom_call.1} parent=11 // pred_fallthru
          _
        // Predicated region
        $region25: #{tpu_custom_call.1} parent=11 // pred_check
          %p228 = pneg %p126
        $region26: #{tpu_custom_call.1} parent=11 // pred_check_branch
          %230 = sbr.rel (%p228) target = $region28
        $region27: #{tpu_custom_call.1} parent=11 // pred_region
          _
        $region28: #{tpu_custom_call.1} parent=11 // pred_fallthru
          _
        // Predicated region
        $region29: #{tpu_custom_call.1} parent=11 // pred_check
          %p231 = pneg %p147
        $region30: #{tpu_custom_call.1} parent=11 // pred_check_branch
          %233 = sbr.rel (%p231) target = $region32
        $region31: #{tpu_custom_call.1} parent=11 // pred_region
          _
        $region32: #{tpu_custom_call.1} parent=11 // pred_fallthru
          _
        // Predicated region
        $region33: #{tpu_custom_call.1} parent=11 // pred_check
          %p234 = pneg %p168
        $region34: #{tpu_custom_call.1} parent=11 // pred_check_branch
          %236 = sbr.rel (%p234) target = $region36
        $region35: #{tpu_custom_call.1} parent=11 // pred_region
          _
        $region36: #{tpu_custom_call.1} parent=11 // pred_fallthru
          _
      $region12: #{tpu_custom_call.1} parent=5 // pred_fallthru
        _
      %p237 = scmp.lt.s32.totalorder %s16, 3
      // Predicated region
      $region37: #{tpu_custom_call.1} parent=5 // pred_check
        %p238 = pneg %p237
      $region38: #{tpu_custom_call.1} parent=5 // pred_check_branch
        %240 = sbr.rel (%p238) target = $region40
      $region39: #{tpu_custom_call.1} parent=5 // pred_region
        // Predicated region
        $region41: #{tpu_custom_call.1} parent=39 // pred_check
          %p241 = pneg %p36
        $region42: #{tpu_custom_call.1} parent=39 // pred_check_branch
          %243 = sbr.rel (%p241) target = $region44
        $region43: #{tpu_custom_call.1} parent=39 // pred_region
          %p244 = scmp.lt.s32.totalorder %s16, 2
          %s245 = scalar_select %p244, %s16, 2
          %s246 = smul.addr %s245, 8
          %s247 = scalar_lea.vmem %s0, %s246
        $region44: #{tpu_custom_call.1} parent=39 // pred_fallthru
          _
      $region40: #{tpu_custom_call.1} parent=5 // pred_fallthru
        _
      %p248 = scmp.le.s32.totalorder 1, %s16
      %p249 = scmp.lt.s32.totalorder %s16, 4
      %p250 = pnand %p248, %p249
      %p251 = pneg %p250
      // Predicated region
      $region45: #{tpu_custom_call.1} parent=5 // pred_check
        _
      $region46: #{tpu_custom_call.1} parent=5 // pred_check_branch
        %253 = sbr.rel (%p250) target = $region48
      $region47: #{tpu_custom_call.1} parent=5 // pred_region
        %s254 = ssub.s32 %s16, 1
        // Predicated region
        $region49: #{tpu_custom_call.1} parent=47 // pred_check
          %p255 = pneg %p105
        $region50: #{tpu_custom_call.1} parent=47 // pred_check_branch
          %257 = sbr.rel (%p255) target = $region52
        $region51: #{tpu_custom_call.1} parent=47 // pred_region
          %258 = dma.done [#allocation4], 1024
        $region52: #{tpu_custom_call.1} parent=47 // pred_fallthru
          _
        %p259 = scmp.lt.s32.totalorder %s21, 2
        %s260 = scalar_select %p259, %s21, 2
        %s261 = smul.addr %s260, 8
        %s262 = scalar_lea.vmem %s0, %s261
        %p263 = pneg %p42
        %p264 = pneg %p39
        %p265 = pneg %p63
        %p266 = pneg %p60
        %p267 = pneg %p84
        %p268 = pneg %p81
        %p269 = pneg %p105
        %p270 = pneg %p102
        %p271 = pneg %p126
        %p272 = pneg %p123
        %p273 = pneg %p147
        %p274 = pneg %p144
        %p275 = pneg %p168
        %p276 = pneg %p165
        %p277 = pneg %p194
        %p278 = pneg %p191
        %p279 = scmp.lt.s32.totalorder %s21, 2
        %s280 = scalar_select %p279, %s21, 2
        %s281 = smul.addr %s280, 8
        %s282 = scalar_lea.vmem %s7, %s281
        %p283 = scmp.lt.s32.totalorder %s21, 2
        %s284 = scalar_select %p283, %s21, 2
        %s285 = smul.addr %s284, 8
        %s286 = scalar_lea.vmem %s0, %s285
        %p287 = scmp.lt.s32.totalorder %s21, 2
        %s288 = scalar_select %p287, %s21, 2
        %s289 = smul.addr %s288, 8
        %s290 = scalar_lea.vmem %s7, %s289
        %v292 = vld [vmem:[%s286] sm:$0xff]
        %v293 = vld [vmem:[%s1] sm:$0x1]
        %295 = vset.pattern.permute.xlu0 0
        %296 = vperm.xlu0 %295, %v292
        %v297 = vpop.permute.xlu0 %296
        %v299 = vlaneseq
        %v300 = vshrl.u32 %v299, 7
        %v301 = vsub.s32 0, %v300
        %v302 = vrot.slane %v293, %v301
        %v303 = vmul.f32 %v297, %v302
        %v304 = vld [vmem:[%s1 + $0x1] sm:$0x1]
        %305 = vset.pattern.permute.xlu0 1
        %306 = vperm.xlu0 %305, %v292
        %v307 = vpop.permute.xlu0 %306
        %v309 = vlaneseq
        %v310 = vshrl.u32 %v309, 7
        %v311 = vsub.s32 0, %v310
        %v312 = vrot.slane %v304, %v311
        %v313 = vmul.f32 %v307, %v312
        %v314 = vadd.f32 %v303, %v313
        %v315 = vld [vmem:[%s1 + $0x2] sm:$0x1]
        %316 = vset.pattern.permute.xlu0 2
        %317 = vperm.xlu0 %316, %v292
        %v318 = vpop.permute.xlu0 %317
        %v320 = vlaneseq
        %v321 = vshrl.u32 %v320, 7
        %v322 = vsub.s32 0, %v321
        %v323 = vrot.slane %v315, %v322
        %v324 = vmul.f32 %v318, %v323
        %v325 = vadd.f32 %v314, %v324
        %v326 = vld [vmem:[%s2] sm:$0x1]
        %v328 = vlaneseq
        %v329 = vshrl.u32 %v328, 7
        %v330 = vsub.s32 0, %v329
        %v331 = vrot.slane %v326, %v330
        %v333 = vadd.f32 %v325, %v331
        %v334 = vmax.f32 %v333, 0.0
        %v335 = vpack.c.bf16 %v334, %v334
        %v336 = vld [vmem:[#allocation3] sm:$0xf]
        %v337 = vld [vmem:[#allocation3 + $0x4] sm:$0xf]
        %v338 = vld [vmem:[#allocation3 + $0x8] sm:$0xf]
        %v339 = vld [vmem:[#allocation3 + $0xc] sm:$0xf]
        %v340 = vld [vmem:[#allocation3 + $0x10] sm:$0xf]
        %v341 = vld [vmem:[#allocation3 + $0x14] sm:$0xf]
        %v342 = vld [vmem:[#allocation3 + $0x18] sm:$0xf]
        %v343 = vld [vmem:[#allocation3 + $0x1c] sm:$0xf]
        %v344 = vld [vmem:[#allocation3 + $0x20] sm:$0xf]
        %v345 = vld [vmem:[#allocation3 + $0x24] sm:$0xf]
        %v346 = vld [vmem:[#allocation3 + $0x28] sm:$0xf]
        %v347 = vld [vmem:[#allocation3 + $0x2c] sm:$0xf]
        %v348 = vld [vmem:[#allocation3 + $0x30] sm:$0xf]
        %v349 = vld [vmem:[#allocation3 + $0x34] sm:$0xf]
        %v350 = vld [vmem:[#allocation3 + $0x38] sm:$0xf]
        %v351 = vld [vmem:[#allocation3 + $0x3c] sm:$0xf]
        %v352 = vld [vmem:[%s4] sm:$0x1]
        %v354 = vlaneseq
        %v355 = vshrl.u32 %v354, 7
        %v356 = vsub.s32 0, %v355
        %v357 = vrot.slane %v352, %v356
        %v375 = vunpack.c.l.b16 %v336
        %v376 = vunpack.c.l.b16 %v337
        %v377 = vunpack.c.l.b16 %v338
        %v378 = vunpack.c.l.b16 %v339
        %v379 = vunpack.c.l.b16 %v340
        %v380 = vunpack.c.l.b16 %v341
        %v381 = vunpack.c.l.b16 %v342
        %v382 = vunpack.c.l.b16 %v343
        %v383 = vunpack.c.l.b16 %v344
        %v384 = vunpack.c.l.b16 %v345
        %v385 = vunpack.c.l.b16 %v346
        %v386 = vunpack.c.l.b16 %v347
        %v387 = vunpack.c.l.b16 %v348
        %v388 = vunpack.c.l.b16 %v349
        %v389 = vunpack.c.l.b16 %v350
        %v390 = vunpack.c.l.b16 %v351
        %v391 = vpack.c.b16 %v376, %v375
        %v392 = vpack.c.b16 %v378, %v377
        %v393 = vpack.c.b16 %v380, %v379
        %v394 = vpack.c.b16 %v382, %v381
        %v395 = vpack.c.b16 %v384, %v383
        %v396 = vpack.c.b16 %v386, %v385
        %v397 = vpack.c.b16 %v388, %v387
        %v398 = vpack.c.b16 %v390, %v389
        %407 = vmatprep.subr.bf16.mxu0 0
        %408 = vmatpush1.bf16.msra.mxu0 %v391
        %409 = vmatprep.subr.bf16.mxu0 0
        %410 = vmatpush1.bf16.msra.mxu0 %v392
        %411 = vmatprep.subr.bf16.mxu0 0
        %412 = vmatpush1.bf16.msra.mxu0 %v393
        %413 = vmatprep.subr.bf16.mxu0 0
        %414 = vmatpush1.bf16.msra.mxu0 %v394
        %415 = vmatprep.subr.bf16.mxu0 0
        %416 = vmatpush1.bf16.msra.mxu0 %v395
        %417 = vmatprep.subr.bf16.mxu0 0
        %418 = vmatpush1.bf16.msra.mxu0 %v396
        %419 = vmatprep.subr.bf16.mxu0 0
        %420 = vmatpush1.bf16.msra.mxu0 %v397
        %421 = vmatprep.subr.bf16.mxu0 0
        %422 = vmatpush1.bf16.msra.mxu0 %v398
        %423 = vmatprep.subr.bf16.mxu0 0
        %424 = vmatpush1.bf16.msra.mxu0 0
        %425 = vmatprep.subr.bf16.mxu0 0
        %426 = vmatpush1.bf16.msra.mxu0 0
        %427 = vmatprep.subr.bf16.mxu0 0
        %428 = vmatpush1.bf16.msra.mxu0 0
        %429 = vmatprep.subr.bf16.mxu0 0
        %430 = vmatpush1.bf16.msra.mxu0 0
        %431 = vmatprep.subr.bf16.mxu0 0
        %432 = vmatpush1.bf16.msra.mxu0 0
        %433 = vmatprep.subr.bf16.mxu0 0
        %434 = vmatpush1.bf16.msra.mxu0 0
        %435 = vmatprep.subr.bf16.mxu0 0
        %436 = vmatpush1.bf16.msra.mxu0 0
        %437 = vmatprep.subr.bf16.mxu0 0
        %438 = vmatpush1.bf16.msra.mxu0 0
        %439 = vmatprep.mubr.bf16.mxu0 0
        %440 = vmatmul.mubr.bf16.gmra.mrb[0].mxu0 %v335
        %v441 = vpop.f32.mrb[0].mxu0
        %v442 = vadd.f32 %v357, %v441
        %v443 = vpop.f32.mrb[0].mxu0
        %v444 = vpop.f32.mrb[0].mxu0
        %v445 = vpop.f32.mrb[0].mxu0
        %446 = vdwg.mxu0
        %v447 = vmax.f32 %v442, 0.0
        %v448 = vld [vmem:[%s5] sm:$0x1]
        %v450 = vlaneseq
        %v451 = vshrl.u32 %v450, 7
        %v452 = vsub.s32 0, %v451
        %v453 = vrot.slane %v448, %v452
        %v455 = vmul.f32 %v447, %v453
        %456 = vadd.xlane.f32.xlu0 %v455
        %v457 = vpop.xlane.xlu0 %456
        %v458 = vld [vmem:[#allocation2] sm:$0x1]
        %v460 = vlaneseq
        %v461 = vshrl.u32 %v460, 7
        %v462 = vsub.s32 0, %v461
        %v463 = vrot.slane %v458, %v462
        %v465 = vadd.f32 %v457, %v463
        %vm466 = vcmask 7168
        %467 = vst.msk [vmem:[%s290] sm:$0xff] %vm466, %v465
        %p468 = scmp.lt.s32.totalorder %s21, 2
        %s469 = scalar_select %p468, %s21, 2
        %s470 = smul.addr %s469, 8
        %s471 = scalar_lea.vmem %s7, %s470
        // Predicated region
        $region53: #{tpu_custom_call.1} parent=47 // pred_check
          %p472 = pneg %p191
        $region54: #{tpu_custom_call.1} parent=47 // pred_check_branch
          %474 = sbr.rel (%p472) target = $region56
        $region55: #{tpu_custom_call.1} parent=47 // pred_region
          _
        $region56: #{tpu_custom_call.1} parent=47 // pred_fallthru
          _
      $region48: #{tpu_custom_call.1} parent=5 // pred_fallthru
        _
      %p475 = scmp.le.s32.totalorder 2, %s16
      // Predicated region
      $region57: #{tpu_custom_call.1} parent=5 // pred_check
        %p476 = pneg %p475
      $region58: #{tpu_custom_call.1} parent=5 // pred_check_branch
        %478 = sbr.rel (%p476) target = $region60
      $region59: #{tpu_custom_call.1} parent=5 // pred_region
        %s479 = ssub.s32 %s16, 2
        // Predicated region
        $region61: #{tpu_custom_call.1} parent=59 // pred_check
          %p480 = pneg %p197
        $region62: #{tpu_custom_call.1} parent=59 // pred_check_branch
          %482 = sbr.rel (%p480) target = $region64
        $region63: #{tpu_custom_call.1} parent=59 // pred_region
          %p483 = scmp.lt.s32.totalorder %s22, 2
          %s484 = scalar_select %p483, %s22, 2
          %s485 = smul.addr %s484, 8
          %s486 = scalar_lea.vmem %s7, %s485
        $region64: #{tpu_custom_call.1} parent=59 // pred_fallthru
          _
      $region60: #{tpu_custom_call.1} parent=5 // pred_fallthru
        _
    $region6: #{tpu_custom_call.1} parent=1 // loop_footer
      %s20 = sadd.s32 1, %s16
    $region7: #{tpu_custom_call.1} parent=1 // loop_footer_branch
      %15 = sbr.rel target = $region3
    $region8: #{tpu_custom_call.1} parent=1 // loop_exit
      _
    %487 = vsyncpa [#allocation4], 1
    %s488 = scalar_lea.sflag [#allocation4], 1
    %489 = vsyncpa %s488, 1

</llo_original>
